<compile_context>
chip_gen: v5e
topology: v5e:2x2
jax: 0.10.0
libtpu: 0.0.40
codegen_flags: <defaults>
</compile_context>

<pallas_src>
import functools

import jax
import jax.numpy as jnp
from jax.experimental import pallas as pl
from jax.experimental.pallas import tpu as pltpu


# --------------------------- fused single-pass path ---------------------------

def _pyramid_attn_kernel(x_ref, w1t_ref, b1_ref, w2t_ref, b2_ref, o_ref,
                         *, inv_hw):
    # x_ref:   (Bt, C, HW)
    # w1t_ref: (C, C4)   b1_ref: (1, C4)
    # w2t_ref: (C4, C)   b2_ref: (1, C)
    # o_ref:   (Bt, C, HW)

    # Pass 1: spatial mean with forced f32 accumulation.
    ssum = jnp.sum(x_ref[...].astype(jnp.float32), axis=-1)              # (Bt, C)
    avg = ssum * inv_hw                                                   # (Bt, C)

    # Tiny FC path, batched over images in the sublane dim (off critical path).
    s1 = jnp.dot(avg, w1t_ref[...],
                 preferred_element_type=jnp.float32) + b1_ref[...]        # (Bt, C4)
    s2 = jnp.dot(s1, w2t_ref[...],
                 preferred_element_type=jnp.float32) + b2_ref[...]        # (Bt, C)

    # Pass 2: per-(image, channel) scale broadcast over the spatial lanes.
    o_ref[...] = (x_ref[...] * s2[:, :, None]).astype(o_ref.dtype)


# --------------------------- HW-tiled fallback path ---------------------------

def _reduce_sum_kernel(x_ref, sum_ref, *, hw, thw):
    # x_ref: (1, C, thw) tile of the spatial dim; sum_ref: (1, C, 1) accumulator.
    t = pl.program_id(1)

    @pl.when(t == 0)
    def _():
        sum_ref[...] = jnp.zeros_like(sum_ref)

    lane = jax.lax.broadcasted_iota(jnp.int32, x_ref.shape, dimension=2)
    valid = (t * thw + lane) < hw                     # mask garbage past HW
    xv = jnp.where(valid, x_ref[...].astype(jnp.float32), 0.0)
    sum_ref[...] += jnp.sum(xv, axis=-1, keepdims=True)                   # (1, C, 1)


def _scale_kernel(x_ref, s_ref, o_ref):
    # x_ref: (1, C, thw); s_ref: (1, C, 1); out-of-bounds writes are masked.
    o_ref[...] = (x_ref[...] * s_ref[...]).astype(o_ref.dtype)


# ------------------------------- host-side logic -------------------------------

def _vmem_capacity_bytes():
    try:
        info = pltpu.get_tpu_info()
        return int(getattr(info, "vmem_capacity_bytes", 64 << 20))
    except Exception:
        return 64 << 20  # conservative default (v7x per-TC VMEM)


def _choose_bt(B, bytes_per_image, budget_bytes, prefer_even_grid):
    """Largest Bt dividing B s.t. double-buffered in+out blocks fit the budget.
    Returns None if even a single image does not fit (-> tiled fallback).
    On 2-TC parts, prefer an even number of grid steps so the 'parallel' axis
    splits evenly across TensorCores."""
    if 4 * bytes_per_image > budget_bytes:
        return None
    max_bt = budget_bytes // (4 * bytes_per_image)
    divisors = [d for d in range(1, B + 1) if B % d == 0 and d <= max_bt]
    if not divisors:
        return None
    if prefer_even_grid and B >= 2:
        even = [d for d in divisors if (B // d) % 2 == 0]
        if even:
            return max(even)
    return max(divisors)


def pyramid_attention(x, w1, b1, w2, b2, *, donate_x=False,
                      _vmem_budget_override=None):
    """x: (B, C, H, W). w1: (C//4, C), b1: (C//4,), w2: (C, C//4), b2: (C,)."""
    B, C, H, W = x.shape
    C4 = w1.shape[0]
    HW = H * W
    itemsize = x.dtype.itemsize

    x_flat = x.reshape(B, C, HW)

    # Pre-transpose weights once (outside the kernel) so no in-kernel transposes.
    w1t = jnp.transpose(w1).astype(jnp.float32)       # (C, C4)
    w2t = jnp.transpose(w2).astype(jnp.float32)       # (C4, C)
    b1r = b1.reshape(1, C4).astype(jnp.float32)
    b2r = b2.reshape(1, C).astype(jnp.float32)

    # Generation-aware VMEM policy: block budget ~= 5/8 of physical VMEM
    # (80 MiB on 128-MiB v5e/v6e, 40 MiB on 64-MiB v7x), scoped limit ~= 3/4.
    phys_vmem = _vmem_capacity_bytes()
    budget = phys_vmem * 5 // 8 if _vmem_budget_override is None \
        else int(_vmem_budget_override)
    vmem_limit = phys_vmem * 3 // 4
    prefer_even_grid = phys_vmem <= (64 << 20)        # v7x-style: 2 TCs per chip

    bytes_per_image = C * HW * itemsize
    Bt = _choose_bt(B, bytes_per_image, budget, prefer_even_grid)

    if Bt is not None:
        # ---------- fused path: exactly 1 HBM read + 1 HBM write of x ----------
        kernel = functools.partial(_pyramid_attn_kernel, inv_hw=1.0 / float(HW))
        flops = 2 * B * C * HW + 4 * B * C * C4
        out_flat = pl.pallas_call(
            kernel,
            out_shape=jax.ShapeDtypeStruct((B, C, HW), x.dtype),
            grid_spec=pltpu.PrefetchScalarGridSpec(
                num_scalar_prefetch=0,
                grid=(B // Bt,),
                in_specs=[
                    pl.BlockSpec((Bt, C, HW), lambda b: (b, 0, 0)),
                    pl.BlockSpec((C, C4),     lambda b: (0, 0)),
                    pl.BlockSpec((1, C4),     lambda b: (0, 0)),
                    pl.BlockSpec((C4, C),     lambda b: (0, 0)),
                    pl.BlockSpec((1, C),      lambda b: (0, 0)),
                ],
                out_specs=pl.BlockSpec((Bt, C, HW), lambda b: (b, 0, 0)),
            ),
            compiler_params=pltpu.CompilerParams(
                dimension_semantics=("parallel",),
                vmem_limit_bytes=vmem_limit,
            ),
            cost_estimate=pl.CostEstimate(
                flops=flops,
                transcendentals=0,
                bytes_accessed=2 * B * C * HW * itemsize,
            ),
            input_output_aliases=({0: 0} if donate_x else {}),
        )(x_flat, w1t, b1r, w2t, b2r)
        return out_flat.reshape(B, C, H, W)

    # ---------- two-pass HW-tiled fallback (image too large for VMEM) ----------
    max_thw = budget // (4 * C * itemsize)
    thw = max(128, (max_thw // 128) * 128)
    thw = min(thw, ((HW + 127) // 128) * 128)
    nT = pl.cdiv(HW, thw)

    # Pass A: per-(image, channel) spatial sums (masked at the ragged edge).
    sums = pl.pallas_call(
        functools.partial(_reduce_sum_kernel, hw=HW, thw=thw),
        out_shape=jax.ShapeDtypeStruct((B, C, 1), jnp.float32),
        grid_spec=pltpu.PrefetchScalarGridSpec(
            num_scalar_prefetch=0,
            grid=(B, nT),
            in_specs=[pl.BlockSpec((1, C, thw), lambda b, t: (b, 0, t))],
            out_specs=pl.BlockSpec((1, C, 1), lambda b, t: (b, 0, 0)),
        ),
        compiler_params=pltpu.CompilerParams(
            dimension_semantics=("parallel", "arbitrary"),
            vmem_limit_bytes=vmem_limit,
        ),
        cost_estimate=pl.CostEstimate(
            flops=B * C * HW, transcendentals=0,
            bytes_accessed=B * C * HW * itemsize + B * C * 4),
    )(x_flat)

    # Tiny FC in plain XLA -- negligible vs. the HBM traversals of x.
    avg = sums[:, :, 0] * (1.0 / float(HW))                 # (B, C) f32
    s2 = (avg @ w1t + b1r) @ w2t + b2r                      # (B, C) f32
    s3 = s2.reshape(B, C, 1)

    # Pass B: scale x by the per-(image, channel) factor, tiled over HW.
    out_flat = pl.pallas_call(
        _scale_kernel,
        out_shape=jax.ShapeDtypeStruct((B, C, HW), x.dtype),
        grid_spec=pltpu.PrefetchScalarGridSpec(
            num_scalar_prefetch=0,
            grid=(B, nT),
            in_specs=[
                pl.BlockSpec((1, C, thw), lambda b, t: (b, 0, t)),
                pl.BlockSpec((1, C, 1),   lambda b, t: (b, 0, 0)),
            ],
            out_specs=pl.BlockSpec((1, C, thw), lambda b, t: (b, 0, t)),
        ),
        compiler_params=pltpu.CompilerParams(
            dimension_semantics=("parallel", "parallel"),
            vmem_limit_bytes=vmem_limit,
        ),
        cost_estimate=pl.CostEstimate(
            flops=B * C * HW, transcendentals=0,
            bytes_accessed=2 * B * C * HW * itemsize),
    )(x_flat, s3)
    return out_flat.reshape(B, C, H, W)


# ------------------------------- reference + test ------------------------------

def pyramid_attention_ref(x, w1, b1, w2, b2):
    avg = jnp.mean(x, axis=(2, 3))                      # (B, C)
    s1 = avg @ w1.T + b1                                # (B, C//4)
    s2 = s1 @ w2.T + b2                                 # (B, C)
    return x * s2[:, :, None, None]


def _run_case(key, B, C, H, W, **kw):
    C4 = C // 4
    kx, k1, k2, k3, k4 = jax.random.split(key, 5)
    x = jax.random.normal(kx, (B, C, H, W), dtype=jnp.float32)
    w1 = jax.random.normal(k1, (C4, C), dtype=jnp.float32) * 0.1
    b1 = jax.random.normal(k2, (C4,), dtype=jnp.float32) * 0.1
    w2 = jax.random.normal(k3, (C, C4), dtype=jnp.float32) * 0.1
    b2 = jax.random.normal(k4, (C,), dtype=jnp.float32) * 0.1

    out = jax.block_until_ready(pyramid_attention(x, w1, b1, w2, b2, **kw))
    ref = pyramid_attention_ref(x, w1, b1, w2, b2)
    assert out.shape == (B, C, H, W)
    assert jnp.allclose(out, ref, atol=1e-5, rtol=1e-5), "mismatch vs reference"


if __name__ == "__main__":
    key = jax.random.PRNGKey(0)
    k_a, k_b, k_c = jax.random.split(key, 3)

    # Primary small case (HW already a multiple of 128).
    _run_case(k_a, B=2, C=8, H=16, W=16)
    # Non-128-multiple HW: exercises the no-pad full-HW block (masked vst) path.
    _run_case(k_b, B=4, C=16, H=10, W=10)
    # Force the HW-tiled two-pass fallback (tiny budget) to exercise masking
    # and uneven spatial tiling.
    _run_case(k_c, B=2, C=8, H=20, W=20, _vmem_budget_override=4096)

    print("KERNEL_OK")
</pallas_src>

<mosaic_0001>
module attributes {stable_mosaic.version = 11 : i64} {
  func.func @_pyramid_attn_kernel(%arg0: i32, %arg1: memref<1x8x256xf32, #tpu.memory_space<vmem>>, %arg2: memref<8x2xf32, #tpu.memory_space<vmem>>, %arg3: memref<1x2xf32, #tpu.memory_space<vmem>>, %arg4: memref<2x8xf32, #tpu.memory_space<vmem>>, %arg5: memref<1x8xf32, #tpu.memory_space<vmem>>, %arg6: memref<1x8x256xf32, #tpu.memory_space<vmem>>) attributes {dimension_semantics = [#tpu.dimension_semantics<parallel>], iteration_bounds = array<i64: 2>, scalar_prefetch = 0 : i64, scratch_operands = 0 : i64, tpu.core_type = #tpu.core_type<tc>, window_params = [{transform_indices = @transform_0, window_bounds = array<i64: 1, 8, 256>}, {pipeline_mode = #tpu.pipeline_mode<synchronous>, transform_indices = @transform_1, window_bounds = array<i64: 8, 2>}, {pipeline_mode = #tpu.pipeline_mode<synchronous>, transform_indices = @transform_2, window_bounds = array<i64: 1, 2>}, {pipeline_mode = #tpu.pipeline_mode<synchronous>, transform_indices = @transform_3, window_bounds = array<i64: 2, 8>}, {pipeline_mode = #tpu.pipeline_mode<synchronous>, transform_indices = @transform_4, window_bounds = array<i64: 1, 8>}, {transform_indices = @transform_5, window_bounds = array<i64: 1, 8, 256>}]} {
    %c0 = arith.constant 0 : index
    %c0_0 = arith.constant 0 : index
    %c0_1 = arith.constant 0 : index
    %0 = vector.load %arg1[%c0, %c0_0, %c0_1] : memref<1x8x256xf32, #tpu.memory_space<vmem>>, vector<1x8x256xf32>
    %cst = arith.constant dense<0.000000e+00> : vector<1x8xf32>
    %1 = vector.multi_reduction <add>, %0, %cst [2] : vector<1x8x256xf32> to vector<1x8xf32>
    %cst_2 = arith.constant 3.906250e-03 : f32
    %2 = vector.broadcast %cst_2 : f32 to vector<1x8xf32>
    %3 = arith.mulf %1, %2 : vector<1x8xf32>
    %c0_3 = arith.constant 0 : index
    %c0_4 = arith.constant 0 : index
    %4 = vector.load %arg2[%c0_3, %c0_4] : memref<8x2xf32, #tpu.memory_space<vmem>>, vector<8x2xf32>
    %cst_5 = arith.constant dense<0.000000e+00> : vector<1x2xf32>
    %5 = tpu.matmul %3, %4, %cst_5 {dimension_numbers = #tpu.dot_dimension_numbers<[1], [0], [0], [1], [0, 0, 1, 1], [], []>} : vector<1x8xf32>, vector<8x2xf32>, vector<1x2xf32> -> vector<1x2xf32>
    %c0_6 = arith.constant 0 : index
    %c0_7 = arith.constant 0 : index
    %6 = vector.load %arg3[%c0_6, %c0_7] : memref<1x2xf32, #tpu.memory_space<vmem>>, vector<1x2xf32>
    %7 = arith.addf %5, %6 : vector<1x2xf32>
    %c0_8 = arith.constant 0 : index
    %c0_9 = arith.constant 0 : index
    %8 = vector.load %arg4[%c0_8, %c0_9] : memref<2x8xf32, #tpu.memory_space<vmem>>, vector<2x8xf32>
    %cst_10 = arith.constant dense<0.000000e+00> : vector<1x8xf32>
    %9 = tpu.matmul %7, %8, %cst_10 {dimension_numbers = #tpu.dot_dimension_numbers<[1], [0], [0], [1], [0, 0, 1, 1], [], []>} : vector<1x2xf32>, vector<2x8xf32>, vector<1x8xf32> -> vector<1x8xf32>
    %c0_11 = arith.constant 0 : index
    %c0_12 = arith.constant 0 : index
    %10 = vector.load %arg5[%c0_11, %c0_12] : memref<1x8xf32, #tpu.memory_space<vmem>>, vector<1x8xf32>
    %11 = arith.addf %9, %10 : vector<1x8xf32>
    %c0_13 = arith.constant 0 : index
    %c0_14 = arith.constant 0 : index
    %c0_15 = arith.constant 0 : index
    %12 = vector.load %arg1[%c0_13, %c0_14, %c0_15] : memref<1x8x256xf32, #tpu.memory_space<vmem>>, vector<1x8x256xf32>
    %13 = vector.shape_cast %11 : vector<1x8xf32> to vector<1x8x1xf32>
    %14 = vector.broadcast %13 : vector<1x8x1xf32> to vector<1x8x256xf32>
    %15 = arith.mulf %12, %14 : vector<1x8x256xf32>
    %c0_16 = arith.constant 0 : index
    %c0_17 = arith.constant 0 : index
    %c0_18 = arith.constant 0 : index
    %16 = vector.load %arg6[%c0_16, %c0_17, %c0_18] : memref<1x8x256xf32, #tpu.memory_space<vmem>>, vector<1x8x256xf32>
    tpu.vector_store %arg6[%c0_16, %c0_17, %c0_18], %15 {strides = array<i32>} : memref<1x8x256xf32, #tpu.memory_space<vmem>>, vector<1x8x256xf32>,
    return
  }
  func.func @transform_0(%arg0: i32) -> (i32, i32, i32) {
    %c0_i32 = arith.constant 0 : i32
    %c0_i32_0 = arith.constant 0 : i32
    %c0_i32_1 = arith.constant 0 : i32
    return %arg0, %c0_i32, %c0_i32_0 : i32, i32, i32
  }
  func.func @transform_1(%arg0: i32) -> (i32, i32) {
    %c0_i32 = arith.constant 0 : i32
    %c0_i32_0 = arith.constant 0 : i32
    %c0_i32_1 = arith.constant 0 : i32
    return %c0_i32, %c0_i32_0 : i32, i32
  }
  func.func @transform_2(%arg0: i32) -> (i32, i32) {
    %c0_i32 = arith.constant 0 : i32
    %c0_i32_0 = arith.constant 0 : i32
    %c0_i32_1 = arith.constant 0 : i32
    return %c0_i32, %c0_i32_0 : i32, i32
  }
  func.func @transform_3(%arg0: i32) -> (i32, i32) {
    %c0_i32 = arith.constant 0 : i32
    %c0_i32_0 = arith.constant 0 : i32
    %c0_i32_1 = arith.constant 0 : i32
    return %c0_i32, %c0_i32_0 : i32, i32
  }
  func.func @transform_4(%arg0: i32) -> (i32, i32) {
    %c0_i32 = arith.constant 0 : i32
    %c0_i32_0 = arith.constant 0 : i32
    %c0_i32_1 = arith.constant 0 : i32
    return %c0_i32, %c0_i32_0 : i32, i32
  }
  func.func @transform_5(%arg0: i32) -> (i32, i32, i32) {
    %c0_i32 = arith.constant 0 : i32
    %c0_i32_0 = arith.constant 0 : i32
    %c0_i32_1 = arith.constant 0 : i32
    return %arg0, %c0_i32, %c0_i32_0 : i32, i32, i32
  }
}

</mosaic_0001>

<llo_original>
// kernel: tpu_custom_call.1
$region0: #{tpu_custom_call.1}
  #allocation0 [shape = 'u32[]', space=smem, size = 0x4, offset = 0x4, fixed_abs, tag = 'smem constant byte address 0x4 - core index']
  #allocation1 [shape = 'u32[72,128]{1,0:T(1,128)}', space=vmem, size = 0x9000, scoped, tag = 'internal scratch']
  %s0 = inlined_call_operand.hbm [shape: f32[2,8,256], index: 0, kind: input, shape index: {}]
  %s1 = inlined_call_operand.vmem [shape: f32[8,2], index: 1, kind: input, shape index: {}]
  %s2 = inlined_call_operand.vmem [shape: f32[1,2], index: 2, kind: input, shape index: {}]
  %s3 = inlined_call_operand.vmem [shape: f32[2,8], index: 3, kind: input, shape index: {}]
  %s4 = inlined_call_operand.vmem [shape: f32[1,8], index: 4, kind: input, shape index: {}]
  %s5 = inlined_call_operand.hbm [shape: f32[2,8,256], index: 5, kind: output, shape index: {}]
  %s6 = sld [smem:[#allocation0]]
  $region57: #{tpu_custom_call.1} parent=0
    _
  %s8 = ssub.s32 1, %s6
  %s9 = scalar_select 0, %s8, %s6
  $region1: #{tpu_custom_call.1} parent=0
    #allocation2 [shape = 'u8[16384]{0}', space=vmem, size = 0x4000, scoped, tag = 'input window, operand 0']
    #allocation3 [shape = 's32[2]{0}', space=sflag, size = 0x8, scoped, tag = 'scoped memory for tpu_custom_call.1']
    #allocation4 [shape = 's32[2]{0}', space=sflag, size = 0x8, scoped, tag = 'scoped memory for tpu_custom_call.1']
    #allocation5 [shape = 'u8[16384]{0}', space=vmem, size = 0x4000, scoped, tag = 'output window, operand 0']
    %10 = vsyncpa [#allocation3], 0
    %s11 = scalar_lea.sflag [#allocation3], 1
    %12 = vsyncpa %s11, 0
    %13 = vsyncpa [#allocation4], 0
    %s14 = scalar_lea.sflag [#allocation4], 1
    %15 = vsyncpa %s14, 0
    loop: start=0, step=1, limit=4
    $region2: #{tpu_custom_call.1} parent=1 // loop_pre_header
      _
    $region3: #{tpu_custom_call.1} parent=1 // loop_header
      %s17 = sphi 0, %s21
      %p18 = scmp.ge.s32.totalorder %s17, 4
      %s27 = sphi 0, %s29
      %s30 = sphi 0, %s27
      %s31 = sphi 0, %s30
      %s47 = sphi 0, %s31
      %s51 = sphi 0, %s51
      %s53 = sphi 0, %s51
      %s54 = sphi 0, %s53
      %s68 = sphi 0, %s54
      %s72 = sphi 0, %s72
      %s74 = sphi 0, %s72
      %s75 = sphi 0, %s74
      %s89 = sphi 0, %s75
      %s93 = sphi 0, %s93
      %s95 = sphi 0, %s93
      %s96 = sphi 0, %s95
      %s110 = sphi 0, %s96
      %s114 = sphi 0, %s114
      %s116 = sphi 0, %s114
      %s117 = sphi 0, %s116
      %s131 = sphi 0, %s117
      %s137 = sphi 0, %s139
      %s140 = sphi 0, %s137
      %s141 = sphi 0, %s140
      %s157 = sphi 0, %s141
    $region4: #{tpu_custom_call.1} parent=1 // loop_header_branch
      %20 = sbr.rel (%p18) target = $region8
    $region5: #{tpu_custom_call.1} parent=1 // loop_body
      %s22 = ssub.s32 %s17, 1
      %s23 = ssub.s32 %s17, 2
      %s24 = sadd.s32 %s17, 1
      %s25 = ssub.s32 %s17, %s24
      %p26 = scmp.eq.s32.totalorder %s25, 0
      %s28 = sadd.s32 %s27, 1
      %s29 = scalar_select %p26, %s27, %s28
      %p32 = pneg %p26
      %p33 = scmp.eq.s32.totalorder %s17, 1
      %p34 = por %p32, %p33
      %p35 = scmp.ne.s32.totalorder %s27, %s30
      %p36 = scmp.eq.s32.totalorder %s17, 0
      %p37 = por %p35, %p36
      %p38 = scmp.ne.s32.totalorder %s27, %s30
      %p39 = scmp.eq.s32.totalorder %s22, 1
      %p40 = por %p38, %p39
      %p41 = scmp.ne.s32.totalorder %s30, %s31
      %p42 = scmp.eq.s32.totalorder %s22, 0
      %p43 = por %p41, %p42
      %p44 = scmp.ne.s32.totalorder %s30, %s31
      %p45 = scmp.eq.s32.totalorder %s23, 1
      %p46 = por %p44, %p45
      %p48 = scmp.ne.s32.totalorder %s31, %s47
      %p49 = scmp.eq.s32.totalorder %s23, 0
      %p50 = por %p48, %p49
      %s52 = sadd.s32 %s51, 1
      %p55 = scmp.eq.s32.totalorder %s17, 1
      %p56 = scmp.ne.s32.totalorder %s51, %s53
      %p57 = scmp.eq.s32.totalorder %s17, 0
      %p58 = por %p56, %p57
      %p59 = scmp.ne.s32.totalorder %s51, %s53
      %p60 = scmp.eq.s32.totalorder %s22, 1
      %p61 = por %p59, %p60
      %p62 = scmp.ne.s32.totalorder %s53, %s54
      %p63 = scmp.eq.s32.totalorder %s22, 0
      %p64 = por %p62, %p63
      %p65 = scmp.ne.s32.totalorder %s53, %s54
      %p66 = scmp.eq.s32.totalorder %s23, 1
      %p67 = por %p65, %p66
      %p69 = scmp.ne.s32.totalorder %s54, %s68
      %p70 = scmp.eq.s32.totalorder %s23, 0
      %p71 = por %p69, %p70
      %s73 = sadd.s32 %s72, 1
      %p76 = scmp.eq.s32.totalorder %s17, 1
      %p77 = scmp.ne.s32.totalorder %s72, %s74
      %p78 = scmp.eq.s32.totalorder %s17, 0
      %p79 = por %p77, %p78
      %p80 = scmp.ne.s32.totalorder %s72, %s74
      %p81 = scmp.eq.s32.totalorder %s22, 1
      %p82 = por %p80, %p81
      %p83 = scmp.ne.s32.totalorder %s74, %s75
      %p84 = scmp.eq.s32.totalorder %s22, 0
      %p85 = por %p83, %p84
      %p86 = scmp.ne.s32.totalorder %s74, %s75
      %p87 = scmp.eq.s32.totalorder %s23, 1
      %p88 = por %p86, %p87
      %p90 = scmp.ne.s32.totalorder %s75, %s89
      %p91 = scmp.eq.s32.totalorder %s23, 0
      %p92 = por %p90, %p91
      %s94 = sadd.s32 %s93, 1
      %p97 = scmp.eq.s32.totalorder %s17, 1
      %p98 = scmp.ne.s32.totalorder %s93, %s95
      %p99 = scmp.eq.s32.totalorder %s17, 0
      %p100 = por %p98, %p99
      %p101 = scmp.ne.s32.totalorder %s93, %s95
      %p102 = scmp.eq.s32.totalorder %s22, 1
      %p103 = por %p101, %p102
      %p104 = scmp.ne.s32.totalorder %s95, %s96
      %p105 = scmp.eq.s32.totalorder %s22, 0
      %p106 = por %p104, %p105
      %p107 = scmp.ne.s32.totalorder %s95, %s96
      %p108 = scmp.eq.s32.totalorder %s23, 1
      %p109 = por %p107, %p108
      %p111 = scmp.ne.s32.totalorder %s96, %s110
      %p112 = scmp.eq.s32.totalorder %s23, 0
      %p113 = por %p111, %p112
      %s115 = sadd.s32 %s114, 1
      %p118 = scmp.eq.s32.totalorder %s17, 1
      %p119 = scmp.ne.s32.totalorder %s114, %s116
      %p120 = scmp.eq.s32.totalorder %s17, 0
      %p121 = por %p119, %p120
      %p122 = scmp.ne.s32.totalorder %s114, %s116
      %p123 = scmp.eq.s32.totalorder %s22, 1
      %p124 = por %p122, %p123
      %p125 = scmp.ne.s32.totalorder %s116, %s117
      %p126 = scmp.eq.s32.totalorder %s22, 0
      %p127 = por %p125, %p126
      %p128 = scmp.ne.s32.totalorder %s116, %s117
      %p129 = scmp.eq.s32.totalorder %s23, 1
      %p130 = por %p128, %p129
      %p132 = scmp.ne.s32.totalorder %s117, %s131
      %p133 = scmp.eq.s32.totalorder %s23, 0
      %p134 = por %p132, %p133
      %s135 = ssub.s32 %s17, %s24
      %p136 = scmp.eq.s32.totalorder %s135, 0
      %s138 = sadd.s32 %s137, 1
      %s139 = scalar_select %p136, %s137, %s138
      %p142 = pneg %p136
      %p143 = scmp.eq.s32.totalorder %s17, 1
      %p144 = por %p142, %p143
      %p145 = scmp.ne.s32.totalorder %s137, %s140
      %p146 = scmp.eq.s32.totalorder %s17, 0
      %p147 = por %p145, %p146
      %p148 = scmp.ne.s32.totalorder %s137, %s140
      %p149 = scmp.eq.s32.totalorder %s22, 1
      %p150 = por %p148, %p149
      %p151 = scmp.ne.s32.totalorder %s140, %s141
      %p152 = scmp.eq.s32.totalorder %s22, 0
      %p153 = por %p151, %p152
      %p154 = scmp.ne.s32.totalorder %s140, %s141
      %p155 = scmp.eq.s32.totalorder %s23, 1
      %p156 = por %p154, %p155
      %p158 = scmp.ne.s32.totalorder %s141, %s157
      %p159 = scmp.eq.s32.totalorder %s23, 0
      %p160 = por %p158, %p159
      %p161 = scmp.le.s32.totalorder 1, %s17
      %p162 = scmp.lt.s32.totalorder %s17, 3
      %p163 = pnand %p161, %p162
      %p164 = pneg %p163
      // Predicated region
      $region9: #{tpu_custom_call.1} parent=5 // pred_check
        _
      $region10: #{tpu_custom_call.1} parent=5 // pred_check_branch
        %166 = sbr.rel (%p163) target = $region12
      $region11: #{tpu_custom_call.1} parent=5 // pred_region
        %s167 = ssub.s32 %s17, 1
        // Predicated region
        $region13: #{tpu_custom_call.1} parent=11 // pred_check
          %p168 = pneg %p64
        $region14: #{tpu_custom_call.1} parent=11 // pred_check_branch
          %170 = sbr.rel (%p168) target = $region16
        $region15: #{tpu_custom_call.1} parent=11 // pred_region
          _
        $region16: #{tpu_custom_call.1} parent=11 // pred_fallthru
          _
        // Predicated region
        $region17: #{tpu_custom_call.1} parent=11 // pred_check
          %p171 = pneg %p85
        $region18: #{tpu_custom_call.1} parent=11 // pred_check_branch
          %173 = sbr.rel (%p171) target = $region20
        $region19: #{tpu_custom_call.1} parent=11 // pred_region
          _
        $region20: #{tpu_custom_call.1} parent=11 // pred_fallthru
          _
        // Predicated region
        $region21: #{tpu_custom_call.1} parent=11 // pred_check
          %p174 = pneg %p106
        $region22: #{tpu_custom_call.1} parent=11 // pred_check_branch
          %176 = sbr.rel (%p174) target = $region24
        $region23: #{tpu_custom_call.1} parent=11 // pred_region
          _
        $region24: #{tpu_custom_call.1} parent=11 // pred_fallthru
          _
        // Predicated region
        $region25: #{tpu_custom_call.1} parent=11 // pred_check
          %p177 = pneg %p127
        $region26: #{tpu_custom_call.1} parent=11 // pred_check_branch
          %179 = sbr.rel (%p177) target = $region28
        $region27: #{tpu_custom_call.1} parent=11 // pred_region
          _
        $region28: #{tpu_custom_call.1} parent=11 // pred_fallthru
          _
      $region12: #{tpu_custom_call.1} parent=5 // pred_fallthru
        _
      %p180 = scmp.lt.s32.totalorder %s17, 2
      // Predicated region
      $region29: #{tpu_custom_call.1} parent=5 // pred_check
        %p181 = pneg %p180
      $region30: #{tpu_custom_call.1} parent=5 // pred_check_branch
        %183 = sbr.rel (%p181) target = $region32
      $region31: #{tpu_custom_call.1} parent=5 // pred_region
        // Predicated region
        $region33: #{tpu_custom_call.1} parent=31 // pred_check
          %p184 = pneg %p37
        $region34: #{tpu_custom_call.1} parent=31 // pred_check_branch
          %186 = sbr.rel (%p184) target = $region36
        $region35: #{tpu_custom_call.1} parent=31 // pred_region
          %s187 = sand.u32 %s27, 1
          %s188 = scalar_lea.sflag [#allocation3], %s187
          %s189 = sand.u32 %s27, 1
          %s190 = smul.addr %s189, 16
          %s191 = scalar_lea.vmem [#allocation2], %s190
          %193 = vsyncadd %s188, 0
          %s194 = smul.addr %s17, 2
          %s195 = smul.addr %s194, 8
          %s196 = scalar_lea.hbm %s0, %s195
          %s198 = sshll.u32 %s196, 4
          %s199 = int_to_ptr.hbm [resolvable:$true] %s198
          %s200 = sshll.u32 %s191, 4
          %s201 = int_to_ptr.vmem [resolvable:$true] %s200
          %203 = dma.hbm_to_vmem [thread:$0]  %s199, 256, %s201, %s188
        $region36: #{tpu_custom_call.1} parent=31 // pred_fallthru
          _
      $region32: #{tpu_custom_call.1} parent=5 // pred_fallthru
        _
      %p204 = scmp.le.s32.totalorder 1, %s17
      %p205 = scmp.lt.s32.totalorder %s17, 3
      %p206 = pnand %p204, %p205
      %p207 = pneg %p206
      // Predicated region
      $region37: #{tpu_custom_call.1} parent=5 // pred_check
        _
      $region38: #{tpu_custom_call.1} parent=5 // pred_check_branch
        %209 = sbr.rel (%p206) target = $region40
      $region39: #{tpu_custom_call.1} parent=5 // pred_region
        %s210 = ssub.s32 %s17, 1
        %s211 = sand.u32 %s30, 1
        %s212 = scalar_lea.sflag [#allocation3], %s211
        %s213 = sand.u32 %s30, 1
        %s214 = smul.addr %s213, 16
        %s215 = scalar_lea.vmem [#allocation2], %s214
        // Predicated region
        $region41: #{tpu_custom_call.1} parent=39 // pred_check
          %p216 = pneg %p43
        $region42: #{tpu_custom_call.1} parent=39 // pred_check_branch
          %218 = sbr.rel (%p216) target = $region44
        $region43: #{tpu_custom_call.1} parent=39 // pred_region
          %220 = dma.done %s212, 256
        $region44: #{tpu_custom_call.1} parent=39 // pred_fallthru
          _
        %s221 = sand.u32 %s30, 1
        %s222 = scalar_lea.sflag [#allocation3], %s221
        %s223 = sand.u32 %s30, 1
        %s224 = smul.addr %s223, 16
        %s225 = scalar_lea.vmem [#allocation2], %s224
        %p226 = pneg %p43
        %p227 = pneg %p40
        %p228 = pneg %p64
        %p229 = pneg %p61
        %p230 = pneg %p85
        %p231 = pneg %p82
        %p232 = pneg %p106
        %p233 = pneg %p103
        %p234 = pneg %p127
        %p235 = pneg %p124
        %p236 = pneg %p153
        %p237 = pneg %p150
        %s238 = sand.u32 %s140, 1
        %s239 = scalar_lea.sflag [#allocation4], %s238
        %s240 = sand.u32 %s140, 1
        %s241 = smul.addr %s240, 16
        %s242 = scalar_lea.vmem [#allocation5], %s241
        %v243 = vld [vmem:[%s215] sm:$0xff]
        %v244 = vld [vmem:[%s215 + $0x8] sm:$0xff]
        %v245 = vadd.f32 %v243, %v244
        %246 = vadd.xlane.f32.xlu0 %v245
        %v247 = vpop.xlane.xlu0 %246
        %v248 = vmul.f32 %v247, 0.00390625
        %v249 = vld [vmem:[%s1] sm:$0xff]
        %v250 = vld [vmem:[%s2] sm:$0x1]
        %v252 = vlaneseq
        %v253 = vand.u32 %v252, 127
        %v254 = vperm.slane %v248, %v253
        %vm255 = vcmask 64512
        %v256 = vsel %vm255, %v254, 0
        %258 = vmatpush.msra.mxu0 0.0
        %259 = vmatpush.msra.mxu0 0.0
        %260 = vmatpush.msra.mxu0 0.0
        %261 = vmatpush.msra.mxu0 0.0
        %262 = vmatpush.msra.mxu0 0.0
        %263 = vmatpush.msra.mxu0 0.0
        %264 = vmatpush.msra.mxu0 0.0
        %265 = vmatpush.msra.mxu0 0.0
        %266 = vmatpush.msra.mxu0 0.0
        %267 = vmatpush.msra.mxu0 0.0
        %268 = vmatpush.msra.mxu0 0.0
        %269 = vmatpush.msra.mxu0 0.0
        %270 = vmatpush.msra.mxu0 0.0
        %271 = vmatpush.msra.mxu0 0.0
        %272 = vmatpush.msra.mxu0 0.0
        %273 = vmatpush.msra.mxu0 %v249
        %274 = vmatmul.f32.gmra.mxu0 %v256
        %v275 = vpop.f32.mrf.mxu0
        %v276 = vadd.f32 %v250, %v275
        %277 = vdwg.mxu0
        %v278 = vld [vmem:[%s3] sm:$0x3]
        %v279 = vld [vmem:[%s4] sm:$0x1]
        %vm280 = vcmask 15360
        %v282 = vsel %vm280, %v276, 0
        %vm284 = vcmask 1041408
        %v286 = vsel %vm284, %v278, 0
        %288 = vmatpush.msra.mxu0 0.0
        %289 = vmatpush.msra.mxu0 0.0
        %290 = vmatpush.msra.mxu0 0.0
        %291 = vmatpush.msra.mxu0 0.0
        %292 = vmatpush.msra.mxu0 0.0
        %293 = vmatpush.msra.mxu0 0.0
        %294 = vmatpush.msra.mxu0 0.0
        %295 = vmatpush.msra.mxu0 0.0
        %296 = vmatpush.msra.mxu0 0.0
        %297 = vmatpush.msra.mxu0 0.0
        %298 = vmatpush.msra.mxu0 0.0
        %299 = vmatpush.msra.mxu0 0.0
        %300 = vmatpush.msra.mxu0 0.0
        %301 = vmatpush.msra.mxu0 0.0
        %302 = vmatpush.msra.mxu0 0.0
        %303 = vmatpush.msra.mxu0 %v286
        %304 = vmatmul.f32.gmra.mxu0 %v282
        %v305 = vpop.f32.mrf.mxu0
        %v306 = vadd.f32 %v279, %v305
        %307 = vdwg.mxu0
        %v308 = vperm.slane %v306, 0
        %v309 = vlaneseq
        %v310 = vshrl.u32 %v309, 7
        %312 = vset.pattern.permute.xlu0 %v310
        %313 = vperm.xlu0 %312, %v308
        %v314 = vpop.permute.xlu0 %313
        %v315 = vmul.f32 %v243, %v314
        %v316 = vmul.f32 %v244, %v314
        %317 = vst [vmem:[%s242] sm:$0xff] %v315
        %318 = vst [vmem:[%s242 + $0x8] sm:$0xff] %v316
        %s319 = sand.u32 %s140, 1
        %s320 = scalar_lea.sflag [#allocation4], %s319
        %s321 = sand.u32 %s140, 1
        %s322 = smul.addr %s321, 16
        %s323 = scalar_lea.vmem [#allocation5], %s322
        // Predicated region
        $region45: #{tpu_custom_call.1} parent=39 // pred_check
          %p324 = pneg %p150
        $region46: #{tpu_custom_call.1} parent=39 // pred_check_branch
          %326 = sbr.rel (%p324) target = $region48
        $region47: #{tpu_custom_call.1} parent=39 // pred_region
          %328 = vsyncadd %s320, 0
          %s329 = smul.addr %s22, 2
          %s330 = smul.addr %s329, 8
          %s331 = scalar_lea.hbm %s5, %s330
          %s333 = sshll.u32 %s323, 4
          %s334 = int_to_ptr.vmem [resolvable:$true] %s333
          %s335 = sshll.u32 %s331, 4
          %s336 = int_to_ptr.hbm [resolvable:$true] %s335
          %338 = dma.vmem_to_hbm [thread:$0]  %s334, 256, %s336, %s320
        $region48: #{tpu_custom_call.1} parent=39 // pred_fallthru
          _
      $region40: #{tpu_custom_call.1} parent=5 // pred_fallthru
        _
      %p339 = scmp.le.s32.totalorder 2, %s17
      // Predicated region
      $region49: #{tpu_custom_call.1} parent=5 // pred_check
        %p340 = pneg %p339
      $region50: #{tpu_custom_call.1} parent=5 // pred_check_branch
        %342 = sbr.rel (%p340) target = $region52
      $region51: #{tpu_custom_call.1} parent=5 // pred_region
        %s343 = ssub.s32 %s17, 2
        // Predicated region
        $region53: #{tpu_custom_call.1} parent=51 // pred_check
          %p344 = pneg %p156
        $region54: #{tpu_custom_call.1} parent=51 // pred_check_branch
          %346 = sbr.rel (%p344) target = $region56
        $region55: #{tpu_custom_call.1} parent=51 // pred_region
          %s347 = sand.u32 %s141, 1
          %s348 = scalar_lea.sflag [#allocation4], %s347
          %s349 = sand.u32 %s141, 1
          %s350 = smul.addr %s349, 16
          %s351 = scalar_lea.vmem [#allocation5], %s350
          %353 = dma.done %s348, 256
        $region56: #{tpu_custom_call.1} parent=51 // pred_fallthru
          _
      $region52: #{tpu_custom_call.1} parent=5 // pred_fallthru
        _
    $region6: #{tpu_custom_call.1} parent=1 // loop_footer
      %s21 = sadd.s32 1, %s17
    $region7: #{tpu_custom_call.1} parent=1 // loop_footer_branch
      %16 = sbr.rel target = $region3
    $region8: #{tpu_custom_call.1} parent=1 // loop_exit
      _
    %354 = vsyncpa [#allocation3], 1
    %s355 = scalar_lea.sflag [#allocation3], 1
    %356 = vsyncpa %s355, 1
    %357 = vsyncpa [#allocation4], 1
    %s358 = scalar_lea.sflag [#allocation4], 1
    %359 = vsyncpa %s358, 1

</llo_original>
